<compile_context>
chip_gen: v6e
topology: v6e:2x2x1
jax: 0.10.0
libtpu: 0.0.40
codegen_flags: <defaults>
</compile_context>

<pallas_src>
import jax
import jax.numpy as jnp
from jax.experimental import pallas as pl
from jax.experimental.pallas import tpu as pltpu


def _round_up(x, m):
    return ((x + m - 1) // m) * m


def _cdiv(a, b):
    return (a + b - 1) // b


# ----------------------------- Pallas kernel --------------------------------
def decoder_kernel(latent_ref, emb_ref,
                   w0_ref, b0_ref,
                   w1a_ref, w1e_ref, b1_ref,
                   w2a_ref, w2e_ref, b2_ref,
                   out_ref, z2_ref):
    j = pl.program_id(1)

    # The small shared trunk depends only on the batch tile -> compute once per
    # batch tile (first item tile) and keep it in VMEM scratch for the rest.
    @pl.when(j == 0)
    def _():
        # decode_layer[0]: Linear + Tanh   (bf16 operands, f32 accumulation)
        z1 = jnp.tanh(
            jnp.dot(latent_ref[...], w0_ref[...],
                    preferred_element_type=jnp.float32)
            + b0_ref[...])
        # decode_layer[1] on cat([z1, proj0(emb)]); proj0 folded into w1e / b1
        z2 = jnp.tanh(
            jnp.dot(z1.astype(w1a_ref.dtype), w1a_ref[...],
                    preferred_element_type=jnp.float32)
            + jnp.dot(emb_ref[...], w1e_ref[...],
                      preferred_element_type=jnp.float32)
            + b1_ref[...])
        z2_ref[...] = z2.astype(z2_ref.dtype)

    # decode_layer[-1] (no Tanh) on cat([z2, proj1(emb)]); proj1 folded into w2e/b2
    out = (jnp.dot(z2_ref[...], w2a_ref[...], preferred_element_type=jnp.float32)
           + jnp.dot(emb_ref[...], w2e_ref[...], preferred_element_type=jnp.float32)
           + b2_ref[...])
    out_ref[...] = out.astype(out_ref.dtype)


# ------------------------------ wrapper --------------------------------------
def decoder_forward(latent, emb_cate, params, *,
                    compute_dtype=jnp.bfloat16,
                    max_batch_tile=1024, max_item_tile=2048):
    (w0, b0), (w1, b1), (w2, b2) = params["decode"]
    (wp0, bp0), (wp1, bp1) = params["proj"]

    f32 = jnp.float32
    d_lat = w0.shape[0]
    d1 = w0.shape[1]          # decode_layer[0] output width
    d2 = w1.shape[1]          # decode_layer[1] output width
    n_item = w2.shape[1]
    cond_dim = wp0.shape[0]

    # ---- plain-JAX glue: concat split + proj-layer folding (exact algebra) --
    w1a, w1b = w1[:d1], w1[d1:]
    w2a, w2b = w2[:d2], w2[d2:]
    w1e = jnp.dot(wp0.astype(f32), w1b.astype(f32))                   # (cond, d2)
    b1f = b1.astype(f32) + jnp.dot(bp0.astype(f32), w1b.astype(f32))
    w2e = jnp.dot(wp1.astype(f32), w2b.astype(f32))                   # (cond, n_item)
    b2f = b2.astype(f32) + jnp.dot(bp1.astype(f32), w2b.astype(f32))

    # ---- item (N) tiling: lane-dense stores, 256-aligned for real catalogs --
    lane = 256 if n_item > 128 else 128
    n_pad = _round_up(n_item, lane)
    n_tiles_n = max(1, _cdiv(n_pad, max_item_tile))
    tn = _round_up(_cdiv(n_pad, n_tiles_n), lane)
    n_pad = tn * n_tiles_n
    if n_pad != n_item:
        pad_n = n_pad - n_item
        w2a = jnp.pad(w2a, ((0, 0), (0, pad_n)))
        w2e = jnp.pad(w2e, ((0, 0), (0, pad_n)))
        b2f = jnp.pad(b2f, ((0, pad_n),))

    # ---- batch tiling: balanced tiles, >= 2 grid steps for dual-TC sharding -
    B = latent.shape[0]
    n_tiles_b = _cdiv(B, max_batch_tile)
    if B >= 16:
        n_tiles_b = max(n_tiles_b, 2)          # v7x: give both TensorCores work
    tb = _round_up(_cdiv(B, n_tiles_b), 8)
    b_pad = _round_up(B, tb)
    n_tiles_b = b_pad // tb
    if b_pad != B:
        latent = jnp.pad(latent, ((0, b_pad - B), (0, 0)))
        emb_cate = jnp.pad(emb_cate, ((0, b_pad - B), (0, 0)))

    # ---- dtypes: bf16 MXU operands / HBM traffic, f32 biases (VPU adds) -----
    latent = latent.astype(compute_dtype)
    emb_cate = emb_cate.astype(compute_dtype)
    w0c = w0.astype(compute_dtype)
    w1ac = w1a.astype(compute_dtype)
    w1ec = w1e.astype(compute_dtype)
    w2ac = w2a.astype(compute_dtype)
    w2ec = w2e.astype(compute_dtype)
    b0r = b0.astype(f32).reshape(1, -1)
    b1r = b1f.reshape(1, -1)
    b2r = b2f.reshape(1, -1)

    def const_spec(a):
        # Grid-invariant block: stays VMEM-resident across the whole grid.
        # TODO(synk): pipeline_mode=pl.Buffered(1) to single-buffer on v7x.
        return pl.BlockSpec(a.shape, lambda i, j: (0, 0))

    in_specs = [
        pl.BlockSpec((tb, d_lat), lambda i, j: (i, 0)),       # latent (batch-tiled)
        pl.BlockSpec((tb, cond_dim), lambda i, j: (i, 0)),    # emb_cate (batch-tiled)
        const_spec(w0c), const_spec(b0r),
        const_spec(w1ac), const_spec(w1ec), const_spec(b1r),
        pl.BlockSpec((d2, tn), lambda i, j: (0, j)),          # w2a (item-tiled)
        pl.BlockSpec((cond_dim, tn), lambda i, j: (0, j)),    # w2e (item-tiled)
        pl.BlockSpec((1, tn), lambda i, j: (0, j)),           # b2  (item-tiled)
    ]
    out_specs = pl.BlockSpec((tb, tn), lambda i, j: (i, j))

    # ---- VMEM budget: footprint-based, capped by the chip's physical VMEM ---
    esz = jnp.dtype(compute_dtype).itemsize
    row_bytes = tb * (d_lat + cond_dim) * esz + tb * tn * esz      # in/out blocks
    ntile_bytes = (d2 + cond_dim) * tn * esz + tn * 4              # item-tiled weights
    const_bytes = (d_lat * d1 + d1 * d2 + cond_dim * d2) * esz + (d1 + d2) * 4
    scratch_bytes = tb * d2 * esz
    need = 2 * (row_bytes + ntile_bytes + const_bytes) + scratch_bytes
    try:
        phys_vmem = pltpu.get_tpu_info().vmem_capacity_bytes
    except Exception:
        phys_vmem = 64 * 2 ** 20     # v7x per-core VMEM: safe lower bound
    vmem_limit = int(min(phys_vmem * 3 // 4, max(16 * 2 ** 20, 2 * need)))

    out = pl.pallas_call(
        decoder_kernel,
        out_shape=jax.ShapeDtypeStruct((b_pad, n_pad), compute_dtype),
        grid=(n_tiles_b, n_tiles_n),
        in_specs=in_specs,
        out_specs=out_specs,
        scratch_shapes=[pltpu.VMEM((tb, d2), compute_dtype)],
        compiler_params=pltpu.CompilerParams(
            dimension_semantics=("parallel", "arbitrary"),
            vmem_limit_bytes=vmem_limit),
    )(latent, emb_cate, w0c, b0r, w1ac, w1ec, b1r, w2ac, w2ec, b2r)
    return out[:B, :n_item]


# --------------------------- parameter setup ---------------------------------
def make_linear(key, d_in, d_out):
    """PyTorch-style init: U(-1/sqrt(fan_in), 1/sqrt(fan_in)); W stored (in, out)."""
    kw, kb = jax.random.split(key)
    bound = 1.0 / (d_in ** 0.5)
    w = jax.random.uniform(kw, (d_in, d_out), jnp.float32, -bound, bound)
    b = jax.random.uniform(kb, (d_out,), jnp.float32, -bound, bound)
    return w, b


def build_decoder_params(key, n_item, dims, cond_dim):
    in_dims = list(dims[::-1])
    out_dims = [d - d // 4 for d in in_dims[1:]] + [n_item]
    keys = jax.random.split(key, len(in_dims) + len(in_dims) - 1)

    decode = [make_linear(keys[i], d_in, d_out)
              for i, (d_in, d_out) in enumerate(zip(in_dims, out_dims))]

    # proj_layer[idx]: Linear(cond_dim, in_dims[idx+1] // 4) so the concat
    # restores the next decode layer's expected input width.
    proj = [make_linear(keys[len(in_dims) + j], cond_dim, d_next // 4)
            for j, d_next in enumerate(in_dims[1:])]

    return {"decode": decode, "proj": proj}


# ------------------------------ reference ------------------------------------
def reference_forward(latent, emb_cate, params):
    hp = jax.lax.Precision.HIGHEST
    (w0, b0), (w1, b1), (w2, b2) = params["decode"]
    (wp0, bp0), (wp1, bp1) = params["proj"]
    h = jnp.tanh(jnp.dot(latent, w0, precision=hp) + b0)
    h = jnp.concatenate([h, jnp.dot(emb_cate, wp0, precision=hp) + bp0], axis=-1)
    h = jnp.tanh(jnp.dot(h, w1, precision=hp) + b1)
    h = jnp.concatenate([h, jnp.dot(emb_cate, wp1, precision=hp) + bp1], axis=-1)
    return jnp.dot(h, w2, precision=hp) + b2


# -------------------------------- main ----------------------------------------
if __name__ == "__main__":
    # Small synthetic config: dims are the *encoder* dims; decoder reverses them.
    n_item = 64
    dims = [32, 24, 16]       # in_dims = [16, 24, 32]; out_dims = [18, 24, 64]
    cond_dim = 12
    batch = 8

    key = jax.random.PRNGKey(0)
    kp, kl, ke = jax.random.split(key, 3)

    params = build_decoder_params(kp, n_item, dims, cond_dim)
    latent = jax.random.normal(kl, (batch, dims[-1]), jnp.float32)     # (8, 16)
    emb_cate = jax.random.normal(ke, (batch, cond_dim), jnp.float32)   # (8, 12)

    fwd = jax.jit(decoder_forward)
    out = jax.block_until_ready(fwd(latent, emb_cate, params))

    ref = reference_forward(latent, emb_cate, params)
    assert out.shape == (batch, n_item), out.shape
    max_err = float(jnp.max(jnp.abs(out.astype(jnp.float32) - ref)))
    # End-to-end bf16 storage with f32 MXU accumulation: tolerance sized for bf16.
    assert max_err < 5e-2, max_err

    print("KERNEL_OK")
</pallas_src>

<mosaic_0001>
module attributes {stable_mosaic.version = 11 : i64} {
  func.func @decoder_kernel(%arg0: i32, %arg1: i32, %arg2: memref<8x16xbf16, #tpu.memory_space<vmem>>, %arg3: memref<8x12xbf16, #tpu.memory_space<vmem>>, %arg4: memref<16x18xbf16, #tpu.memory_space<vmem>>, %arg5: memref<1x18xf32, #tpu.memory_space<vmem>>, %arg6: memref<18x24xbf16, #tpu.memory_space<vmem>>, %arg7: memref<12x24xbf16, #tpu.memory_space<vmem>>, %arg8: memref<1x24xf32, #tpu.memory_space<vmem>>, %arg9: memref<24x128xbf16, #tpu.memory_space<vmem>>, %arg10: memref<12x128xbf16, #tpu.memory_space<vmem>>, %arg11: memref<1x128xf32, #tpu.memory_space<vmem>>, %arg12: memref<8x128xbf16, #tpu.memory_space<vmem>>, %arg13: memref<8x24xbf16, #tpu.memory_space<vmem>>) attributes {dimension_semantics = [#tpu.dimension_semantics<parallel>, #tpu.dimension_semantics<arbitrary>], iteration_bounds = array<i64: 1, 1>, scalar_prefetch = 0 : i64, scratch_operands = 1 : i64, tpu.core_type = #tpu.core_type<tc>, window_params = [{transform_indices = @transform_0, window_bounds = array<i64: 8, 16>}, {transform_indices = @transform_1, window_bounds = array<i64: 8, 12>}, {pipeline_mode = #tpu.pipeline_mode<synchronous>, transform_indices = @transform_2, window_bounds = array<i64: 16, 18>}, {pipeline_mode = #tpu.pipeline_mode<synchronous>, transform_indices = @transform_3, window_bounds = array<i64: 1, 18>}, {pipeline_mode = #tpu.pipeline_mode<synchronous>, transform_indices = @transform_4, window_bounds = array<i64: 18, 24>}, {pipeline_mode = #tpu.pipeline_mode<synchronous>, transform_indices = @transform_5, window_bounds = array<i64: 12, 24>}, {pipeline_mode = #tpu.pipeline_mode<synchronous>, transform_indices = @transform_6, window_bounds = array<i64: 1, 24>}, {transform_indices = @transform_7, window_bounds = array<i64: 24, 128>}, {transform_indices = @transform_8, window_bounds = array<i64: 12, 128>}, {transform_indices = @transform_9, window_bounds = array<i64: 1, 128>}, {transform_indices = @transform_10, window_bounds = array<i64: 8, 128>}]} {
    %c0_i32 = arith.constant 0 : i32
    %0 = arith.cmpi eq, %arg1, %c0_i32 : i32
    %1 = arith.extui %0 : i1 to i32
    %c0_i32_0 = arith.constant 0 : i32
    %2 = arith.cmpi ne, %1, %c0_i32_0 : i32
    scf.if %2 {
      %c0_13 = arith.constant 0 : index
      %c0_14 = arith.constant 0 : index
      %15 = vector.load %arg2[%c0_13, %c0_14] : memref<8x16xbf16, #tpu.memory_space<vmem>>, vector<8x16xbf16>
      %c0_15 = arith.constant 0 : index
      %c0_16 = arith.constant 0 : index
      %16 = vector.load %arg4[%c0_15, %c0_16] : memref<16x18xbf16, #tpu.memory_space<vmem>>, vector<16x18xbf16>
      %cst_17 = arith.constant dense<0.000000e+00> : vector<8x18xf32>
      %17 = tpu.matmul %15, %16, %cst_17 {dimension_numbers = #tpu.dot_dimension_numbers<[1], [0], [0], [1], [0, 0, 1, 1], [], []>} : vector<8x16xbf16>, vector<16x18xbf16>, vector<8x18xf32> -> vector<8x18xf32>
      %c0_18 = arith.constant 0 : index
      %c0_19 = arith.constant 0 : index
      %18 = vector.load %arg5[%c0_18, %c0_19] : memref<1x18xf32, #tpu.memory_space<vmem>>, vector<1x18xf32>
      %19 = vector.broadcast %18 : vector<1x18xf32> to vector<8x18xf32>
      %20 = arith.addf %17, %19 : vector<8x18xf32>
      %21 = math.tanh %20 : vector<8x18xf32>
      %22 = arith.truncf %21 : vector<8x18xf32> to vector<8x18xbf16>
      %c0_20 = arith.constant 0 : index
      %c0_21 = arith.constant 0 : index
      %23 = vector.load %arg6[%c0_20, %c0_21] : memref<18x24xbf16, #tpu.memory_space<vmem>>, vector<18x24xbf16>
      %cst_22 = arith.constant dense<0.000000e+00> : vector<8x24xf32>
      %24 = tpu.matmul %22, %23, %cst_22 {dimension_numbers = #tpu.dot_dimension_numbers<[1], [0], [0], [1], [0, 0, 1, 1], [], []>} : vector<8x18xbf16>, vector<18x24xbf16>, vector<8x24xf32> -> vector<8x24xf32>
      %c0_23 = arith.constant 0 : index
      %c0_24 = arith.constant 0 : index
      %25 = vector.load %arg3[%c0_23, %c0_24] : memref<8x12xbf16, #tpu.memory_space<vmem>>, vector<8x12xbf16>
      %c0_25 = arith.constant 0 : index
      %c0_26 = arith.constant 0 : index
      %26 = vector.load %arg7[%c0_25, %c0_26] : memref<12x24xbf16, #tpu.memory_space<vmem>>, vector<12x24xbf16>
      %cst_27 = arith.constant dense<0.000000e+00> : vector<8x24xf32>
      %27 = tpu.matmul %25, %26, %cst_27 {dimension_numbers = #tpu.dot_dimension_numbers<[1], [0], [0], [1], [0, 0, 1, 1], [], []>} : vector<8x12xbf16>, vector<12x24xbf16>, vector<8x24xf32> -> vector<8x24xf32>
      %28 = arith.addf %24, %27 : vector<8x24xf32>
      %c0_28 = arith.constant 0 : index
      %c0_29 = arith.constant 0 : index
      %29 = vector.load %arg8[%c0_28, %c0_29] : memref<1x24xf32, #tpu.memory_space<vmem>>, vector<1x24xf32>
      %30 = vector.broadcast %29 : vector<1x24xf32> to vector<8x24xf32>
      %31 = arith.addf %28, %30 : vector<8x24xf32>
      %32 = math.tanh %31 : vector<8x24xf32>
      %33 = arith.truncf %32 : vector<8x24xf32> to vector<8x24xbf16>
      %c0_30 = arith.constant 0 : index
      %c0_31 = arith.constant 0 : index
      %34 = vector.load %arg13[%c0_30, %c0_31] : memref<8x24xbf16, #tpu.memory_space<vmem>>, vector<8x24xbf16>
      tpu.vector_store %arg13[%c0_30, %c0_31], %33 {strides = array<i32>} : memref<8x24xbf16, #tpu.memory_space<vmem>>, vector<8x24xbf16>,
    } else {
    }
    %c0 = arith.constant 0 : index
    %c0_1 = arith.constant 0 : index
    %3 = vector.load %arg13[%c0, %c0_1] : memref<8x24xbf16, #tpu.memory_space<vmem>>, vector<8x24xbf16>
    %c0_2 = arith.constant 0 : index
    %c0_3 = arith.constant 0 : index
    %4 = vector.load %arg9[%c0_2, %c0_3] : memref<24x128xbf16, #tpu.memory_space<vmem>>, vector<24x128xbf16>
    %cst = arith.constant dense<0.000000e+00> : vector<8x128xf32>
    %5 = tpu.matmul %3, %4, %cst {dimension_numbers = #tpu.dot_dimension_numbers<[1], [0], [0], [1], [0, 0, 1, 1], [], []>} : vector<8x24xbf16>, vector<24x128xbf16>, vector<8x128xf32> -> vector<8x128xf32>
    %c0_4 = arith.constant 0 : index
    %c0_5 = arith.constant 0 : index
    %6 = vector.load %arg3[%c0_4, %c0_5] : memref<8x12xbf16, #tpu.memory_space<vmem>>, vector<8x12xbf16>
    %c0_6 = arith.constant 0 : index
    %c0_7 = arith.constant 0 : index
    %7 = vector.load %arg10[%c0_6, %c0_7] : memref<12x128xbf16, #tpu.memory_space<vmem>>, vector<12x128xbf16>
    %cst_8 = arith.constant dense<0.000000e+00> : vector<8x128xf32>
    %8 = tpu.matmul %6, %7, %cst_8 {dimension_numbers = #tpu.dot_dimension_numbers<[1], [0], [0], [1], [0, 0, 1, 1], [], []>} : vector<8x12xbf16>, vector<12x128xbf16>, vector<8x128xf32> -> vector<8x128xf32>
    %9 = arith.addf %5, %8 : vector<8x128xf32>
    %c0_9 = arith.constant 0 : index
    %c0_10 = arith.constant 0 : index
    %10 = vector.load %arg11[%c0_9, %c0_10] : memref<1x128xf32, #tpu.memory_space<vmem>>, vector<1x128xf32>
    %11 = vector.broadcast %10 : vector<1x128xf32> to vector<8x128xf32>
    %12 = arith.addf %9, %11 : vector<8x128xf32>
    %13 = arith.truncf %12 : vector<8x128xf32> to vector<8x128xbf16>
    %c0_11 = arith.constant 0 : index
    %c0_12 = arith.constant 0 : index
    %14 = vector.load %arg12[%c0_11, %c0_12] : memref<8x128xbf16, #tpu.memory_space<vmem>>, vector<8x128xbf16>
    tpu.vector_store %arg12[%c0_11, %c0_12], %13 {strides = array<i32>} : memref<8x128xbf16, #tpu.memory_space<vmem>>, vector<8x128xbf16>,
    return
  }
  func.func @transform_0(%arg0: i32, %arg1: i32) -> (i32, i32) {
    %c0_i32 = arith.constant 0 : i32
    %c0_i32_0 = arith.constant 0 : i32
    return %arg0, %c0_i32 : i32, i32
  }
  func.func @transform_1(%arg0: i32, %arg1: i32) -> (i32, i32) {
    %c0_i32 = arith.constant 0 : i32
    %c0_i32_0 = arith.constant 0 : i32
    return %arg0, %c0_i32 : i32, i32
  }
  func.func @transform_2(%arg0: i32, %arg1: i32) -> (i32, i32) {
    %c0_i32 = arith.constant 0 : i32
    %c0_i32_0 = arith.constant 0 : i32
    %c0_i32_1 = arith.constant 0 : i32
    return %c0_i32, %c0_i32_0 : i32, i32
  }
  func.func @transform_3(%arg0: i32, %arg1: i32) -> (i32, i32) {
    %c0_i32 = arith.constant 0 : i32
    %c0_i32_0 = arith.constant 0 : i32
    %c0_i32_1 = arith.constant 0 : i32
    return %c0_i32, %c0_i32_0 : i32, i32
  }
  func.func @transform_4(%arg0: i32, %arg1: i32) -> (i32, i32) {
    %c0_i32 = arith.constant 0 : i32
    %c0_i32_0 = arith.constant 0 : i32
    %c0_i32_1 = arith.constant 0 : i32
    return %c0_i32, %c0_i32_0 : i32, i32
  }
  func.func @transform_5(%arg0: i32, %arg1: i32) -> (i32, i32) {
    %c0_i32 = arith.constant 0 : i32
    %c0_i32_0 = arith.constant 0 : i32
    %c0_i32_1 = arith.constant 0 : i32
    return %c0_i32, %c0_i32_0 : i32, i32
  }
  func.func @transform_6(%arg0: i32, %arg1: i32) -> (i32, i32) {
    %c0_i32 = arith.constant 0 : i32
    %c0_i32_0 = arith.constant 0 : i32
    %c0_i32_1 = arith.constant 0 : i32
    return %c0_i32, %c0_i32_0 : i32, i32
  }
  func.func @transform_7(%arg0: i32, %arg1: i32) -> (i32, i32) {
    %c0_i32 = arith.constant 0 : i32
    %c0_i32_0 = arith.constant 0 : i32
    return %c0_i32, %arg1 : i32, i32
  }
  func.func @transform_8(%arg0: i32, %arg1: i32) -> (i32, i32) {
    %c0_i32 = arith.constant 0 : i32
    %c0_i32_0 = arith.constant 0 : i32
    return %c0_i32, %arg1 : i32, i32
  }
  func.func @transform_9(%arg0: i32, %arg1: i32) -> (i32, i32) {
    %c0_i32 = arith.constant 0 : i32
    %c0_i32_0 = arith.constant 0 : i32
    return %c0_i32, %arg1 : i32, i32
  }
  func.func @transform_10(%arg0: i32, %arg1: i32) -> (i32, i32) {
    %c0_i32 = arith.constant 0 : i32
    return %arg0, %arg1 : i32, i32
  }
}

</mosaic_0001>

<llo_original>
// kernel: decoder_forward.1
$region0: #{decoder_forward.1}
  #allocation0 [shape = 'u32[]', space=smem, size = 0x4, offset = 0x4, fixed_abs, tag = 'smem constant byte address 0x4 - core index']
  #allocation1 [shape = 'u32[144,128]{1,0:T(1,128)}', space=vmem, size = 0x12000, scoped, tag = 'internal scratch']
  #allocation2 [shape = 'bf16[8,24]{1,0:T(8,128)(2,1)}', space=vmem, size = 0x800, scoped, tag = 'scratch operand']
  %s0 = inlined_call_operand.vmem [shape: bf16[8,16], index: 0, kind: input, shape index: {}]
  %s1 = inlined_call_operand.vmem [shape: bf16[8,12], index: 1, kind: input, shape index: {}]
  %s2 = inlined_call_operand.vmem [shape: bf16[16,18], index: 2, kind: input, shape index: {}]
  %s3 = inlined_call_operand.vmem [shape: f32[1,18], index: 3, kind: input, shape index: {}]
  %s4 = inlined_call_operand.vmem [shape: bf16[18,24], index: 4, kind: input, shape index: {}]
  %s5 = inlined_call_operand.vmem [shape: bf16[12,24], index: 5, kind: input, shape index: {}]
  %s6 = inlined_call_operand.vmem [shape: f32[1,24], index: 6, kind: input, shape index: {}]
  %s7 = inlined_call_operand.vmem [shape: bf16[24,128], index: 7, kind: input, shape index: {}]
  %s8 = inlined_call_operand.vmem [shape: bf16[12,128], index: 8, kind: input, shape index: {}]
  %s9 = inlined_call_operand.vmem [shape: f32[1,128], index: 9, kind: input, shape index: {}]
  %s10 = inlined_call_operand.hbm [shape: bf16[8,128], index: 10, kind: output, shape index: {}]
  %s11 = sld [smem:[#allocation0]]
  $region54: #{decoder_forward.1} parent=0
    _
  %s13 = ssub.s32 1, %s11
  %s14 = scalar_select 0, %s13, %s11
  $region1: #{decoder_forward.1} parent=0
    #allocation3 [shape = 'u8[2048]{0}', space=vmem, size = 0x800, scoped, tag = 'output window, operand 0, single buffered']
    #allocation4 [shape = 's32[1]{0}', space=sflag, size = 0x4, scoped, tag = 'scoped memory for decoder_forward.1']
    %15 = vsyncpa [#allocation4], 0
    // Predicated region
    $region2: #{decoder_forward.1} parent=1 // pred_check
      _
    $region3: #{decoder_forward.1} parent=1 // pred_check_branch
      %17 = sbr.rel (0) target = $region5
    $region4: #{decoder_forward.1} parent=1 // pred_region
      _
    $region5: #{decoder_forward.1} parent=1 // pred_fallthru
      _
    // Predicated region
    $region6: #{decoder_forward.1} parent=1 // pred_check
      _
    $region7: #{decoder_forward.1} parent=1 // pred_check_branch
      %19 = sbr.rel (0) target = $region9
    $region8: #{decoder_forward.1} parent=1 // pred_region
      _
    $region9: #{decoder_forward.1} parent=1 // pred_fallthru
      _
    // Predicated region
    $region10: #{decoder_forward.1} parent=1 // pred_check
      _
    $region11: #{decoder_forward.1} parent=1 // pred_check_branch
      %21 = sbr.rel (0) target = $region13
    $region12: #{decoder_forward.1} parent=1 // pred_region
      _
    $region13: #{decoder_forward.1} parent=1 // pred_fallthru
      _
    // Predicated region
    $region14: #{decoder_forward.1} parent=1 // pred_check
      _
    $region15: #{decoder_forward.1} parent=1 // pred_check_branch
      %23 = sbr.rel (0) target = $region17
    $region16: #{decoder_forward.1} parent=1 // pred_region
      _
    $region17: #{decoder_forward.1} parent=1 // pred_fallthru
      _
    // Predicated region
    $region18: #{decoder_forward.1} parent=1 // pred_check
      _
    $region19: #{decoder_forward.1} parent=1 // pred_check_branch
      %25 = sbr.rel (0) target = $region21
    $region20: #{decoder_forward.1} parent=1 // pred_region
      _
    $region21: #{decoder_forward.1} parent=1 // pred_fallthru
      _
    // Predicated region
    $region22: #{decoder_forward.1} parent=1 // pred_check
      _
    $region23: #{decoder_forward.1} parent=1 // pred_check_branch
      %27 = sbr.rel (0) target = $region25
    $region24: #{decoder_forward.1} parent=1 // pred_region
      _
    $region25: #{decoder_forward.1} parent=1 // pred_fallthru
      _
    // Predicated region
    $region26: #{decoder_forward.1} parent=1 // pred_check
      _
    $region27: #{decoder_forward.1} parent=1 // pred_check_branch
      %29 = sbr.rel (0) target = $region29
    $region28: #{decoder_forward.1} parent=1 // pred_region
      _
    $region29: #{decoder_forward.1} parent=1 // pred_fallthru
      _
    // Predicated region
    $region30: #{decoder_forward.1} parent=1 // pred_check
      _
    $region31: #{decoder_forward.1} parent=1 // pred_check_branch
      %31 = sbr.rel (0) target = $region33
    $region32: #{decoder_forward.1} parent=1 // pred_region
      _
    $region33: #{decoder_forward.1} parent=1 // pred_fallthru
      _
    // Predicated region
    $region34: #{decoder_forward.1} parent=1 // pred_check
      _
    $region35: #{decoder_forward.1} parent=1 // pred_check_branch
      %33 = sbr.rel (0) target = $region37
    $region36: #{decoder_forward.1} parent=1 // pred_region
      _
    $region37: #{decoder_forward.1} parent=1 // pred_fallthru
      _
    // Predicated region
    $region38: #{decoder_forward.1} parent=1 // pred_check
      _
    $region39: #{decoder_forward.1} parent=1 // pred_check_branch
      %35 = sbr.rel (0) target = $region41
    $region40: #{decoder_forward.1} parent=1 // pred_region
      _
    $region41: #{decoder_forward.1} parent=1 // pred_fallthru
      _
    %p37 = scmp.eq.s32.totalorder 0, 0
    // Predicated region
    $region42: #{decoder_forward.1} parent=1 // pred_check
      %p38 = pneg %p37
    $region43: #{decoder_forward.1} parent=1 // pred_check_branch
      %40 = sbr.rel (%p38) target = $region45
    $region44: #{decoder_forward.1} parent=1 // pred_region
      %v41 = vld [vmem:[%s0] sm:$0xf]
      %v42 = vld [vmem:[%s2] sm:$0xf]
      %v43 = vld [vmem:[%s2 + $0x4] sm:$0xf]
      %v44 = vld [vmem:[%s3] sm:$0x1]
      %v46 = vlaneseq
      %v47 = vshrl.u32 %v46, 7
      %v48 = vsub.s32 0, %v47
      %v49 = vrot.slane %v44, %v48
      %v53 = vunpack.c.l.b16 %v42
      %v54 = vunpack.c.l.b16 %v43
      %v55 = vpack.c.b16 %v54, %v53
      %vm57 = vcmask 130048
      %v59 = vsel %vm57, %v41, 0
      %61 = vmatprep.subr.bf16.mxu0 0
      %62 = vmatpush1.bf16.msra.mxu0 0
      %63 = vmatprep.subr.bf16.mxu0 0
      %64 = vmatpush1.bf16.msra.mxu0 0
      %65 = vmatprep.subr.bf16.mxu0 0
      %66 = vmatpush1.bf16.msra.mxu0 0
      %67 = vmatprep.subr.bf16.mxu0 0
      %68 = vmatpush1.bf16.msra.mxu0 0
      %69 = vmatprep.subr.bf16.mxu0 0
      %70 = vmatpush1.bf16.msra.mxu0 0
      %71 = vmatprep.subr.bf16.mxu0 0
      %72 = vmatpush1.bf16.msra.mxu0 0
      %73 = vmatprep.subr.bf16.mxu0 0
      %74 = vmatpush1.bf16.msra.mxu0 0
      %75 = vmatprep.subr.bf16.mxu0 0
      %76 = vmatpush1.bf16.msra.mxu0 %v55
      %77 = vmatprep.subr.bf16.mxu0 0
      %78 = vmatpush2.bf16.msra.mxu0 0
      %79 = vmatprep.subr.bf16.mxu0 0
      %80 = vmatpush2.bf16.msra.mxu0 0
      %81 = vmatprep.subr.bf16.mxu0 0
      %82 = vmatpush2.bf16.msra.mxu0 0
      %83 = vmatprep.subr.bf16.mxu0 0
      %84 = vmatpush2.bf16.msra.mxu0 0
      %85 = vmatprep.subr.bf16.mxu0 0
      %86 = vmatpush2.bf16.msra.mxu0 0
      %87 = vmatprep.subr.bf16.mxu0 0
      %88 = vmatpush2.bf16.msra.mxu0 0
      %89 = vmatprep.subr.bf16.mxu0 0
      %90 = vmatpush2.bf16.msra.mxu0 0
      %91 = vmatprep.subr.bf16.mxu0 0
      %92 = vmatpush2.bf16.msra.mxu0 0
      %93 = vmatprep.mubr.bf16.mxu0 0
      %94 = vmatmul.mubr.bf16.gmra.mxu0 %v59
      %v95 = vpop.f32.mrf.mxu0
      %v96 = vadd.f32 %v49, %v95
      %v97 = vpop.f32.mrf.mxu0
      %v98 = vpop.f32.mrf.mxu0
      %v99 = vpop.f32.mrf.mxu0
      %100 = vdwg.mxu0
      %v101 = vtanh.pop %v96
      %v102 = vpack.c.bf16 %v101, %v101
      %v103 = vld [vmem:[%s4] sm:$0xf]
      %v104 = vld [vmem:[%s4 + $0x4] sm:$0xf]
      %v105 = vld [vmem:[%s4 + $0x8] sm:$0x1]
      %v106 = vld [vmem:[%s1] sm:$0xf]
      %v107 = vld [vmem:[%s5] sm:$0xf]
      %v108 = vld [vmem:[%s5 + $0x4] sm:$0x3]
      %v111 = vunpack.c.l.b16 %v107
      %v112 = vunpack.c.l.b16 %v108
      %v113 = vpack.c.b16 %v112, %v111
      %vm114 = vcmask 97280
      %v116 = vsel %vm114, %v106, 0
      %vm118 = vcmask 1045504
      %v120 = vsel %vm118, %v113, 0
      %122 = vmatprep.subr.bf16.mxu0 0
      %123 = vmatpush1.bf16.msra.mxu0 0
      %124 = vmatprep.subr.bf16.mxu0 0
      %125 = vmatpush1.bf16.msra.mxu0 0
      %126 = vmatprep.subr.bf16.mxu0 0
      %127 = vmatpush1.bf16.msra.mxu0 0
      %128 = vmatprep.subr.bf16.mxu0 0
      %129 = vmatpush1.bf16.msra.mxu0 0
      %130 = vmatprep.subr.bf16.mxu0 0
      %131 = vmatpush1.bf16.msra.mxu0 0
      %132 = vmatprep.subr.bf16.mxu0 0
      %133 = vmatpush1.bf16.msra.mxu0 0
      %134 = vmatprep.subr.bf16.mxu0 0
      %135 = vmatpush1.bf16.msra.mxu0 0
      %136 = vmatprep.subr.bf16.mxu0 0
      %137 = vmatpush1.bf16.msra.mxu0 %v120
      %138 = vmatprep.subr.bf16.mxu0 0
      %139 = vmatpush2.bf16.msra.mxu0 0
      %140 = vmatprep.subr.bf16.mxu0 0
      %141 = vmatpush2.bf16.msra.mxu0 0
      %142 = vmatprep.subr.bf16.mxu0 0
      %143 = vmatpush2.bf16.msra.mxu0 0
      %144 = vmatprep.subr.bf16.mxu0 0
      %145 = vmatpush2.bf16.msra.mxu0 0
      %146 = vmatprep.subr.bf16.mxu0 0
      %147 = vmatpush2.bf16.msra.mxu0 0
      %148 = vmatprep.subr.bf16.mxu0 0
      %149 = vmatpush2.bf16.msra.mxu0 0
      %150 = vmatprep.subr.bf16.mxu0 0
      %151 = vmatpush2.bf16.msra.mxu0 0
      %152 = vmatprep.subr.bf16.mxu0 0
      %153 = vmatpush2.bf16.msra.mxu0 0
      %154 = vmatprep.mubr.bf16.mxu0 0
      %155 = vmatmul.mubr.bf16.gmra.mxu0 %v116
      %v156 = vpop.f32.mrf.mxu0
      %v157 = vadd.f32 0.0, %v156
      %v158 = vpop.f32.mrf.mxu0
      %v159 = vpop.f32.mrf.mxu0
      %v160 = vpop.f32.mrf.mxu0
      %161 = vdwg.mxu0
      %v165 = vunpack.c.l.b16 %v103
      %v166 = vunpack.c.l.b16 %v104
      %v167 = vunpack.c.l.b16 %v105
      %v168 = vpack.c.b16 %v166, %v165
      %v169 = vpack.c.b16 %v167, %v167
      %vm171 = vcmask 146432
      %v173 = vsel %vm171, %v102, 0
      %vm175 = vcmask 1040384
      %v177 = vsel %vm175, %v169, 0
      %179 = vmatprep.subr.bf16.mxu0 0
      %180 = vmatpush1.bf16.msra.mxu0 0
      %181 = vmatprep.subr.bf16.mxu0 0
      %182 = vmatpush1.bf16.msra.mxu0 0
      %183 = vmatprep.subr.bf16.mxu0 0
      %184 = vmatpush1.bf16.msra.mxu0 0
      %185 = vmatprep.subr.bf16.mxu0 0
      %186 = vmatpush1.bf16.msra.mxu0 0
      %187 = vmatprep.subr.bf16.mxu0 0
      %188 = vmatpush1.bf16.msra.mxu0 0
      %189 = vmatprep.subr.bf16.mxu0 0
      %190 = vmatpush1.bf16.msra.mxu0 0
      %191 = vmatprep.subr.bf16.mxu0 0
      %192 = vmatpush1.bf16.msra.mxu0 %v177
      %193 = vmatprep.subr.bf16.mxu0 0
      %194 = vmatpush1.bf16.msra.mxu0 %v168
      %195 = vmatprep.subr.bf16.mxu0 0
      %196 = vmatpush2.bf16.msra.mxu0 0
      %197 = vmatprep.subr.bf16.mxu0 0
      %198 = vmatpush2.bf16.msra.mxu0 0
      %199 = vmatprep.subr.bf16.mxu0 0
      %200 = vmatpush2.bf16.msra.mxu0 0
      %201 = vmatprep.subr.bf16.mxu0 0
      %202 = vmatpush2.bf16.msra.mxu0 0
      %203 = vmatprep.subr.bf16.mxu0 0
      %204 = vmatpush2.bf16.msra.mxu0 0
      %205 = vmatprep.subr.bf16.mxu0 0
      %206 = vmatpush2.bf16.msra.mxu0 0
      %207 = vmatprep.subr.bf16.mxu0 0
      %208 = vmatpush2.bf16.msra.mxu0 0
      %209 = vmatprep.subr.bf16.mxu0 0
      %210 = vmatpush2.bf16.msra.mxu0 0
      %211 = vmatprep.mubr.bf16.mxu0 0
      %212 = vmatmul.mubr.bf16.gmra.mxu0 %v173
      %v213 = vpop.f32.mrf.mxu0
      %v214 = vadd.f32 %v157, %v213
      %v215 = vpop.f32.mrf.mxu0
      %v216 = vpop.f32.mrf.mxu0
      %v217 = vpop.f32.mrf.mxu0
      %218 = vdwg.mxu0
      %v219 = vld [vmem:[%s6] sm:$0x1]
      %v221 = vlaneseq
      %v222 = vshrl.u32 %v221, 7
      %v223 = vsub.s32 0, %v222
      %v224 = vrot.slane %v219, %v223
      %v226 = vadd.f32 %v214, %v224
      %v227 = vtanh.pop %v226
      %v228 = vpack.c.bf16 %v227, %v227
      %vm229 = vcmask 191488
      %230 = vst.msk [vmem:[#allocation2] sm:$0xf] %vm229, %v228
    $region45: #{decoder_forward.1} parent=1 // pred_fallthru
      _
    %v231 = vld [vmem:[#allocation2] sm:$0xf]
    %v232 = vld [vmem:[%s7] sm:$0xf]
    %v233 = vld [vmem:[%s7 + $0x4] sm:$0xf]
    %v234 = vld [vmem:[%s7 + $0x8] sm:$0xf]
    %v235 = vld [vmem:[%s1] sm:$0xf]
    %v236 = vld [vmem:[%s8] sm:$0xf]
    %v237 = vld [vmem:[%s8 + $0x4] sm:$0x3]
    %v240 = vunpack.c.l.b16 %v236
    %v241 = vunpack.c.l.b16 %v237
    %v242 = vpack.c.b16 %v241, %v240
    %vm243 = vcmask 97280
    %v245 = vsel %vm243, %v235, 0
    %vm247 = vcmask 1045504
    %v249 = vsel %vm247, %v242, 0
    %251 = vmatprep.subr.bf16.mxu0 0
    %252 = vmatpush1.bf16.msra.mxu0 0
    %253 = vmatprep.subr.bf16.mxu0 0
    %254 = vmatpush1.bf16.msra.mxu0 0
    %255 = vmatprep.subr.bf16.mxu0 0
    %256 = vmatpush1.bf16.msra.mxu0 0
    %257 = vmatprep.subr.bf16.mxu0 0
    %258 = vmatpush1.bf16.msra.mxu0 0
    %259 = vmatprep.subr.bf16.mxu0 0
    %260 = vmatpush1.bf16.msra.mxu0 0
    %261 = vmatprep.subr.bf16.mxu0 0
    %262 = vmatpush1.bf16.msra.mxu0 0
    %263 = vmatprep.subr.bf16.mxu0 0
    %264 = vmatpush1.bf16.msra.mxu0 0
    %265 = vmatprep.subr.bf16.mxu0 0
    %266 = vmatpush1.bf16.msra.mxu0 %v249
    %267 = vmatprep.subr.bf16.mxu0 0
    %268 = vmatpush2.bf16.msra.mxu0 0
    %269 = vmatprep.subr.bf16.mxu0 0
    %270 = vmatpush2.bf16.msra.mxu0 0
    %271 = vmatprep.subr.bf16.mxu0 0
    %272 = vmatpush2.bf16.msra.mxu0 0
    %273 = vmatprep.subr.bf16.mxu0 0
    %274 = vmatpush2.bf16.msra.mxu0 0
    %275 = vmatprep.subr.bf16.mxu0 0
    %276 = vmatpush2.bf16.msra.mxu0 0
    %277 = vmatprep.subr.bf16.mxu0 0
    %278 = vmatpush2.bf16.msra.mxu0 0
    %279 = vmatprep.subr.bf16.mxu0 0
    %280 = vmatpush2.bf16.msra.mxu0 0
    %281 = vmatprep.subr.bf16.mxu0 0
    %282 = vmatpush2.bf16.msra.mxu0 0
    %283 = vmatprep.mubr.bf16.mxu0 0
    %284 = vmatmul.mubr.bf16.gmra.mxu0 %v245
    %v285 = vpop.f32.mrf.mxu0
    %v286 = vadd.f32 0.0, %v285
    %v287 = vpop.f32.mrf.mxu0
    %v288 = vpop.f32.mrf.mxu0
    %v289 = vpop.f32.mrf.mxu0
    %290 = vdwg.mxu0
    %v294 = vunpack.c.l.b16 %v232
    %v295 = vunpack.c.l.b16 %v233
    %v296 = vunpack.c.l.b16 %v234
    %v297 = vpack.c.b16 %v295, %v294
    %v298 = vpack.c.b16 %v296, %v296
    %vm300 = vcmask 195584
    %v302 = vsel %vm300, %v231, 0
    %vm304 = vcmask 1043456
    %v306 = vsel %vm304, %v298, 0
    %308 = vmatprep.subr.bf16.mxu0 0
    %309 = vmatpush1.bf16.msra.mxu0 0
    %310 = vmatprep.subr.bf16.mxu0 0
    %311 = vmatpush1.bf16.msra.mxu0 0
    %312 = vmatprep.subr.bf16.mxu0 0
    %313 = vmatpush1.bf16.msra.mxu0 0
    %314 = vmatprep.subr.bf16.mxu0 0
    %315 = vmatpush1.bf16.msra.mxu0 0
    %316 = vmatprep.subr.bf16.mxu0 0
    %317 = vmatpush1.bf16.msra.mxu0 0
    %318 = vmatprep.subr.bf16.mxu0 0
    %319 = vmatpush1.bf16.msra.mxu0 0
    %320 = vmatprep.subr.bf16.mxu0 0
    %321 = vmatpush1.bf16.msra.mxu0 %v306
    %322 = vmatprep.subr.bf16.mxu0 0
    %323 = vmatpush1.bf16.msra.mxu0 %v297
    %324 = vmatprep.subr.bf16.mxu0 0
    %325 = vmatpush2.bf16.msra.mxu0 0
    %326 = vmatprep.subr.bf16.mxu0 0
    %327 = vmatpush2.bf16.msra.mxu0 0
    %328 = vmatprep.subr.bf16.mxu0 0
    %329 = vmatpush2.bf16.msra.mxu0 0
    %330 = vmatprep.subr.bf16.mxu0 0
    %331 = vmatpush2.bf16.msra.mxu0 0
    %332 = vmatprep.subr.bf16.mxu0 0
    %333 = vmatpush2.bf16.msra.mxu0 0
    %334 = vmatprep.subr.bf16.mxu0 0
    %335 = vmatpush2.bf16.msra.mxu0 0
    %336 = vmatprep.subr.bf16.mxu0 0
    %337 = vmatpush2.bf16.msra.mxu0 0
    %338 = vmatprep.subr.bf16.mxu0 0
    %339 = vmatpush2.bf16.msra.mxu0 0
    %340 = vmatprep.mubr.bf16.mxu0 0
    %341 = vmatmul.mubr.bf16.gmra.mxu0 %v302
    %v342 = vpop.f32.mrf.mxu0
    %v343 = vadd.f32 %v286, %v342
    %v344 = vpop.f32.mrf.mxu0
    %v345 = vpop.f32.mrf.mxu0
    %v346 = vpop.f32.mrf.mxu0
    %347 = vdwg.mxu0
    %v348 = vld [vmem:[%s9] sm:$0x1]
    %v350 = vlaneseq
    %v351 = vshrl.u32 %v350, 7
    %v352 = vsub.s32 0, %v351
    %v353 = vrot.slane %v348, %v352
    %v355 = vadd.f32 %v343, %v353
    %v356 = vpack.c.bf16 %v355, %v355
    %357 = vst [vmem:[#allocation3] sm:$0xf] %v356
    // Predicated region
    $region46: #{decoder_forward.1} parent=1 // pred_check
      _
    $region47: #{decoder_forward.1} parent=1 // pred_check_branch
      %359 = sbr.rel (0) target = $region49
    $region48: #{decoder_forward.1} parent=1 // pred_region
      %s361 = ssub.s32 64, 64
      %362 = vsyncadd [#allocation4], %s361
      %s364 = sshll.u32 [#allocation3], 4
      %s365 = int_to_ptr.vmem [resolvable:$true] %s364
      %367 = dma.vmem_to_hbm [thread:$0]  %s365, 64, %s10, [#allocation4]
    $region49: #{decoder_forward.1} parent=1 // pred_fallthru
      _
    // Predicated region
    $region50: #{decoder_forward.1} parent=1 // pred_check
      _
    $region51: #{decoder_forward.1} parent=1 // pred_check_branch
      %369 = sbr.rel (0) target = $region53
    $region52: #{decoder_forward.1} parent=1 // pred_region
      %370 = dma.done [#allocation4], 64
    $region53: #{decoder_forward.1} parent=1 // pred_fallthru
      _
    %371 = vsyncpa [#allocation4], 1

</llo_original>
